<compile_context>
chip_gen: v5e
topology: v5e:2x2
jax: 0.10.0
libtpu: 0.0.40
codegen_flags: <defaults>
</compile_context>

<pallas_src>
import numpy as np
import jax
import jax.numpy as jnp
from jax import lax
from jax.experimental import pallas as pl
from jax.experimental.pallas import tpu as pltpu


def _round_up(n, m):
    return ((n + m - 1) // m) * m


def _choose_spatial_tile(hw, max_tile=8192):
    """Largest spatial (lane) tile that divides HW; multiple of 128 when actually tiling."""
    if hw <= max_tile:
        return hw
    for t in range(max_tile - max_tile % 128, 127, -128):
        if hw % t == 0:
            return t
    return hw  # no clean 128-multiple divisor: fall back to a single tile


# ---------------------------------------------------------------------------
# Pallas kernel: whole PixelDiscriminator forward, two-pass tiled InstanceNorm.
#   grid = (batch, pass, spatial_tile); pass 0 = statistics, pass 1 = normalize + emit.
# ---------------------------------------------------------------------------
def _make_kernel(hw_total, eps=1e-5, slope=0.2):
    hw_f = float(hw_total)

    def kernel(x_ref, w1_ref, b1_ref, w2_ref, b2_ref, w3_ref, b3_ref,
               o_ref, mean_sc, m2_sc):
        p = pl.program_id(1)            # 0: stats pass, 1: normalize/emit pass
        t = pl.program_id(2)            # spatial tile index
        thw = x_ref.shape[-1]           # static tile width (lanes)

        # Conv1x1 #1 + LeakyReLU(0.2), Conv1x1 #2  (channels in sublanes, pixels in lanes).
        x = x_ref[0]                                                        # (Cin, THW)
        h = jnp.dot(w1_ref[...], x, preferred_element_type=jnp.float32) + b1_ref[...]
        h = jnp.where(h > 0, h, slope * h)
        h = jnp.dot(w2_ref[...], h, preferred_element_type=jnp.float32) + b2_ref[...]

        @pl.when(p == 0)
        def _stats_pass():
            @pl.when(t == 0)
            def _():
                mean_sc[...] = jnp.zeros_like(mean_sc)
                m2_sc[...] = jnp.zeros_like(m2_sc)

            tile_mean = jnp.mean(h, axis=1, keepdims=True)                  # (NF2, 1)
            cen = h - tile_mean
            tile_m2 = jnp.sum(cen * cen, axis=1, keepdims=True)             # (NF2, 1)

            # Pairwise (Chan) combination -> numerically stable streaming mean / M2.
            # Equal-size tiles: n_b/(n_a+n_b) = 1/(t+1), n_a*n_b/(n_a+n_b) = THW*t/(t+1).
            t_f = t.astype(jnp.float32)
            w_new = 1.0 / (t_f + 1.0)
            delta = tile_mean - mean_sc[...]
            mean_sc[...] = mean_sc[...] + delta * w_new
            m2_sc[...] = m2_sc[...] + tile_m2 + delta * delta * (float(thw) * t_f * w_new)

        @pl.when(p == 1)
        def _emit_pass():
            # InstanceNorm2d: biased variance over all HW pixels, eps=1e-5, no affine.
            # Zero-padded channels stay identically 0 (mean=0, var=0 -> 0 after the norm).
            var = m2_sc[...] * (1.0 / hw_f)
            inv = lax.rsqrt(var + eps)                                      # EUP
            hn = (h - mean_sc[...]) * inv
            hn = jnp.where(hn > 0, hn, slope * hn)
            # Final 2nf -> 1 projection: broadcast-mul + sublane reduce (avoid M=1 matmul).
            o_ref[0] = jnp.sum(w3_ref[...] * hn, axis=0, keepdims=True) + b3_ref[...]

    return kernel


# ---------------------------------------------------------------------------
# Wrapper: reshape-only layout plumbing + sublane-padded weights + pallas_call.
# ---------------------------------------------------------------------------
def pixel_discriminator_forward(x_nchw, params, *, tile_hw=None):
    w1, b1, w2, b2, w3, b3 = params
    B, Cin, H, W = x_nchw.shape
    nf = w1.shape[0]
    nf2 = w2.shape[0]
    HW = H * W

    NF1 = _round_up(nf, 8)        # hidden channels live in the sublane dim: pad to 8 only
    NF2 = _round_up(nf2, 8)

    THW = _choose_spatial_tile(HW) if tile_hw is None else int(tile_hw)
    assert HW % THW == 0 and (THW == HW or THW % 128 == 0), (HW, THW)
    nt = HW // THW

    # NCHW -> (B, Cin, HW): pure reshape, channels stay in the sublane dim.
    x = x_nchw.reshape(B, Cin, HW).astype(jnp.float32)

    # 1x1 conv weights as (Cout, Cin) matrices; zero-padded rows/cols are mathematically
    # inert through LeakyReLU / InstanceNorm and contribute nothing to the final projection.
    w1m = jnp.zeros((NF1, Cin), jnp.float32).at[:nf, :].set(w1.reshape(nf, Cin))
    b1m = jnp.zeros((NF1, 1), jnp.float32).at[:nf, 0].set(b1)
    w2m = jnp.zeros((NF2, NF1), jnp.float32).at[:nf2, :nf].set(w2.reshape(nf2, nf))
    b2m = jnp.zeros((NF2, 1), jnp.float32).at[:nf2, 0].set(b2)
    w3m = jnp.zeros((NF2, 1), jnp.float32).at[:nf2, 0].set(w3.reshape(nf2))
    b3m = b3.reshape(1, 1).astype(jnp.float32)

    # VMEM budget derived from the per-step tile footprint (clamped to stay safe on
    # v7x's 64 MiB physical VMEM; with THW <= 8192 this is a few MiB).
    pad8 = lambda n: max(8, _round_up(n, 8))
    per_step = 4 * THW * (2 * pad8(Cin) + 2 * 8 + NF1 + 3 * NF2)        # in/out dbl-buffered + live intermediates
    weight_bytes = 4 * 2 * 128 * (2 * NF1 + 4 * NF2 + 2)                # lane-padded, dbl-buffered (overestimate)
    vmem_limit = int(min(48 * 2 ** 20, max(4 * 2 ** 20, 2 * per_step + weight_bytes)))

    cost = pl.CostEstimate(
        flops=int(2 * B * HW * (2 * (Cin * NF1 + NF1 * NF2) + NF2) + 8 * B * HW * NF2),
        transcendentals=int(B * NF2),
        bytes_accessed=int(4 * (2 * B * Cin * HW + 2 * B * HW
                                + NF1 * Cin + NF2 * NF1 + 2 * NF2 + NF1 + 2)),
    )

    out = pl.pallas_call(
        _make_kernel(HW),
        out_shape=jax.ShapeDtypeStruct((B, 1, HW), jnp.float32),
        grid_spec=pltpu.PrefetchScalarGridSpec(
            num_scalar_prefetch=0,
            grid=(B, 2, nt),                       # batch, (stats | emit) pass, spatial tile
            in_specs=[
                pl.BlockSpec((1, Cin, THW), lambda b, p, t: (b, 0, t)),   # activations
                pl.BlockSpec((NF1, Cin), lambda b, p, t: (0, 0)),         # conv1 weight
                pl.BlockSpec((NF1, 1), lambda b, p, t: (0, 0)),           # conv1 bias
                pl.BlockSpec((NF2, NF1), lambda b, p, t: (0, 0)),         # conv2 weight
                pl.BlockSpec((NF2, 1), lambda b, p, t: (0, 0)),           # conv2 bias
                pl.BlockSpec((NF2, 1), lambda b, p, t: (0, 0)),           # conv3 weight
                pl.BlockSpec((1, 1), lambda b, p, t: (0, 0)),             # conv3 bias
            ],
            out_specs=pl.BlockSpec((1, 1, THW), lambda b, p, t: (b, 0, t)),  # lane-dense
            scratch_shapes=[
                pltpu.VMEM((NF2, 1), jnp.float32),   # running per-channel mean
                pltpu.VMEM((NF2, 1), jnp.float32),   # running per-channel M2
            ],
        ),
        compiler_params=pltpu.CompilerParams(
            dimension_semantics=("parallel", "arbitrary", "arbitrary"),
            vmem_limit_bytes=vmem_limit,
        ),
        cost_estimate=cost,
    )(x, w1m, b1m, w2m, b2m, w3m, b3m)

    # (B, 1, HW) -> (B, 1, H, W): pure reshape, no transpose.
    return out.reshape(B, 1, H, W)


# ---------------------------------------------------------------------------
# Deterministic parameter init (shapes follow the PyTorch module __init__).
# ---------------------------------------------------------------------------
def init_params(key, input_channels, num_conv_filters):
    nf = num_conv_filters
    k1, k2, k3, k4, k5, k6 = jax.random.split(key, 6)
    w1 = jax.random.normal(k1, (nf, input_channels, 1, 1), jnp.float32) / np.sqrt(input_channels)
    b1 = 0.05 * jax.random.normal(k2, (nf,), jnp.float32)
    w2 = jax.random.normal(k3, (2 * nf, nf, 1, 1), jnp.float32) / np.sqrt(nf)
    b2 = 0.05 * jax.random.normal(k4, (2 * nf,), jnp.float32)
    w3 = jax.random.normal(k5, (1, 2 * nf, 1, 1), jnp.float32) / np.sqrt(2 * nf)
    b3 = 0.05 * jax.random.normal(k6, (1,), jnp.float32)
    return (w1, b1, w2, b2, w3, b3)


# ---------------------------------------------------------------------------
# Pure-JAX reference (exact PyTorch semantics, f32) for correctness check.
# ---------------------------------------------------------------------------
def reference_forward(x_nchw, params):
    w1, b1, w2, b2, w3, b3 = params
    x = x_nchw.astype(jnp.float32)
    nf, cin = w1.shape[0], w1.shape[1]
    nf2 = w2.shape[0]
    h = jnp.einsum("bchw,oc->bohw", x, w1.reshape(nf, cin)) + b1[None, :, None, None]
    h = jnp.where(h > 0, h, 0.2 * h)
    h = jnp.einsum("bchw,oc->bohw", h, w2.reshape(nf2, nf)) + b2[None, :, None, None]
    mean = h.mean(axis=(2, 3), keepdims=True)
    var = ((h - mean) ** 2).mean(axis=(2, 3), keepdims=True)   # biased var == torch InstanceNorm2d
    h = (h - mean) / jnp.sqrt(var + 1e-5)
    h = jnp.where(h > 0, h, 0.2 * h)
    out = jnp.einsum("bchw,oc->bohw", h, w3.reshape(1, nf2)) + b3[None, :, None, None]
    return out


if __name__ == "__main__":
    B, C_in, H, W = 2, 4, 16, 16
    num_conv_filters = 32

    key = jax.random.PRNGKey(0)
    key, kx = jax.random.split(key)
    x = jax.random.normal(kx, (B, C_in, H, W), jnp.float32)     # NCHW, like PyTorch
    params = init_params(key, C_in, num_conv_filters)

    ref = jax.block_until_ready(reference_forward(x, params))

    # Default path: HW=256 -> a single spatial tile per pass.
    out = jax.block_until_ready(pixel_discriminator_forward(x, params))
    assert out.shape == (B, 1, H, W), out.shape
    np.testing.assert_allclose(np.asarray(out), np.asarray(ref), rtol=1e-3, atol=1e-3)

    # Forced spatial tiling (2 tiles): exercises the streaming two-pass InstanceNorm path
    # that bounds VMEM for large images (e.g. 256x256 PatchGAN inputs on v7x).
    out_t = jax.block_until_ready(pixel_discriminator_forward(x, params, tile_hw=128))
    np.testing.assert_allclose(np.asarray(out_t), np.asarray(ref), rtol=1e-3, atol=1e-3)

    print("KERNEL_OK")
</pallas_src>

<mosaic_0001>
module attributes {stable_mosaic.version = 11 : i64} {
  func.func @kernel(%arg0: i32, %arg1: i32, %arg2: i32, %arg3: memref<1x4x256xf32, #tpu.memory_space<vmem>>, %arg4: memref<32x4xf32, #tpu.memory_space<vmem>>, %arg5: memref<32x1xf32, #tpu.memory_space<vmem>>, %arg6: memref<64x32xf32, #tpu.memory_space<vmem>>, %arg7: memref<64x1xf32, #tpu.memory_space<vmem>>, %arg8: memref<64x1xf32, #tpu.memory_space<vmem>>, %arg9: memref<1x1xf32, #tpu.memory_space<vmem>>, %arg10: memref<1x1x256xf32, #tpu.memory_space<vmem>>, %arg11: memref<64x1xf32, #tpu.memory_space<vmem>>, %arg12: memref<64x1xf32, #tpu.memory_space<vmem>>) attributes {dimension_semantics = [#tpu.dimension_semantics<parallel>, #tpu.dimension_semantics<arbitrary>, #tpu.dimension_semantics<arbitrary>], iteration_bounds = array<i64: 2, 2, 1>, scalar_prefetch = 0 : i64, scratch_operands = 2 : i64, tpu.core_type = #tpu.core_type<tc>, window_params = [{transform_indices = @transform_0, window_bounds = array<i64: 1, 4, 256>}, {pipeline_mode = #tpu.pipeline_mode<synchronous>, transform_indices = @transform_1, window_bounds = array<i64: 32, 4>}, {pipeline_mode = #tpu.pipeline_mode<synchronous>, transform_indices = @transform_2, window_bounds = array<i64: 32, 1>}, {pipeline_mode = #tpu.pipeline_mode<synchronous>, transform_indices = @transform_3, window_bounds = array<i64: 64, 32>}, {pipeline_mode = #tpu.pipeline_mode<synchronous>, transform_indices = @transform_4, window_bounds = array<i64: 64, 1>}, {pipeline_mode = #tpu.pipeline_mode<synchronous>, transform_indices = @transform_5, window_bounds = array<i64: 64, 1>}, {pipeline_mode = #tpu.pipeline_mode<synchronous>, transform_indices = @transform_6, window_bounds = array<i64: 1, 1>}, {transform_indices = @transform_7, window_bounds = array<i64: 1, 1, 256>}]} {
    %c0 = arith.constant 0 : index
    %c0_0 = arith.constant 0 : index
    %c0_1 = arith.constant 0 : index
    %0 = vector.load %arg3[%c0, %c0_0, %c0_1] : memref<1x4x256xf32, #tpu.memory_space<vmem>>, vector<1x4x256xf32>
    %1 = vector.shape_cast %0 : vector<1x4x256xf32> to vector<4x256xf32>
    %c0_2 = arith.constant 0 : index
    %c0_3 = arith.constant 0 : index
    %2 = vector.load %arg4[%c0_2, %c0_3] : memref<32x4xf32, #tpu.memory_space<vmem>>, vector<32x4xf32>
    %cst = arith.constant dense<0.000000e+00> : vector<32x256xf32>
    %3 = tpu.matmul %2, %1, %cst {dimension_numbers = #tpu.dot_dimension_numbers<[1], [0], [0], [1], [0, 0, 1, 1], [], []>} : vector<32x4xf32>, vector<4x256xf32>, vector<32x256xf32> -> vector<32x256xf32>
    %c0_4 = arith.constant 0 : index
    %c0_5 = arith.constant 0 : index
    %4 = vector.load %arg5[%c0_4, %c0_5] : memref<32x1xf32, #tpu.memory_space<vmem>>, vector<32x1xf32>
    %5 = vector.broadcast %4 : vector<32x1xf32> to vector<32x256xf32>
    %6 = arith.addf %3, %5 : vector<32x256xf32>
    %cst_6 = arith.constant 0.000000e+00 : f32
    %7 = vector.broadcast %cst_6 : f32 to vector<32x256xf32>
    %8 = arith.cmpf ogt, %6, %7 : vector<32x256xf32>
    %cst_7 = arith.constant 2.000000e-01 : f32
    %9 = vector.broadcast %cst_7 : f32 to vector<32x256xf32>
    %10 = arith.mulf %9, %6 : vector<32x256xf32>
    %11 = arith.select %8, %6, %10 : vector<32x256xi1>, vector<32x256xf32>
    %c0_8 = arith.constant 0 : index
    %c0_9 = arith.constant 0 : index
    %12 = vector.load %arg6[%c0_8, %c0_9] : memref<64x32xf32, #tpu.memory_space<vmem>>, vector<64x32xf32>
    %cst_10 = arith.constant dense<0.000000e+00> : vector<64x256xf32>
    %13 = tpu.matmul %12, %11, %cst_10 {dimension_numbers = #tpu.dot_dimension_numbers<[1], [0], [0], [1], [0, 0, 1, 1], [], []>} : vector<64x32xf32>, vector<32x256xf32>, vector<64x256xf32> -> vector<64x256xf32>
    %c0_11 = arith.constant 0 : index
    %c0_12 = arith.constant 0 : index
    %14 = vector.load %arg7[%c0_11, %c0_12] : memref<64x1xf32, #tpu.memory_space<vmem>>, vector<64x1xf32>
    %15 = vector.broadcast %14 : vector<64x1xf32> to vector<64x256xf32>
    %16 = arith.addf %13, %15 : vector<64x256xf32>
    %c0_i32 = arith.constant 0 : i32
    %17 = arith.cmpi eq, %arg1, %c0_i32 : i32
    %18 = arith.extui %17 : i1 to i32
    %c0_i32_13 = arith.constant 0 : i32
    %19 = arith.cmpi ne, %18, %c0_i32_13 : i32
    scf.if %19 {
      %c0_i32_15 = arith.constant 0 : i32
      %23 = arith.cmpi eq, %arg2, %c0_i32_15 : i32
      %24 = arith.extui %23 : i1 to i32
      %c0_i32_16 = arith.constant 0 : i32
      %25 = arith.cmpi ne, %24, %c0_i32_16 : i32
      scf.if %25 {
        %cst_33 = arith.constant 0.000000e+00 : f32
        %54 = vector.broadcast %cst_33 : f32 to vector<64x1xf32>
        %c0_34 = arith.constant 0 : index
        %c0_35 = arith.constant 0 : index
        %55 = vector.load %arg11[%c0_34, %c0_35] : memref<64x1xf32, #tpu.memory_space<vmem>>, vector<64x1xf32>
        tpu.vector_store %arg11[%c0_34, %c0_35], %54 {strides = array<i32>} : memref<64x1xf32, #tpu.memory_space<vmem>>, vector<64x1xf32>,
        %cst_36 = arith.constant 0.000000e+00 : f32
        %56 = vector.broadcast %cst_36 : f32 to vector<64x1xf32>
        %c0_37 = arith.constant 0 : index
        %c0_38 = arith.constant 0 : index
        %57 = vector.load %arg12[%c0_37, %c0_38] : memref<64x1xf32, #tpu.memory_space<vmem>>, vector<64x1xf32>
        tpu.vector_store %arg12[%c0_37, %c0_38], %56 {strides = array<i32>} : memref<64x1xf32, #tpu.memory_space<vmem>>, vector<64x1xf32>,
      } else {
      }
      %cst_17 = arith.constant dense<0.000000e+00> : vector<64xf32>
      %26 = vector.multi_reduction <add>, %16, %cst_17 [1] : vector<64x256xf32> to vector<64xf32>
      %27 = vector.shape_cast %26 : vector<64xf32> to vector<64x1xf32>
      %cst_18 = arith.constant 2.560000e+02 : f32
      %28 = vector.broadcast %cst_18 : f32 to vector<64x1xf32>
      %29 = arith.divf %27, %28 : vector<64x1xf32>
      %30 = vector.broadcast %29 : vector<64x1xf32> to vector<64x256xf32>
      %31 = arith.subf %16, %30 : vector<64x256xf32>
      %32 = arith.mulf %31, %31 : vector<64x256xf32>
      %cst_19 = arith.constant dense<0.000000e+00> : vector<64xf32>
      %33 = vector.multi_reduction <add>, %32, %cst_19 [1] : vector<64x256xf32> to vector<64xf32>
      %34 = vector.shape_cast %33 : vector<64xf32> to vector<64x1xf32>
      %35 = arith.sitofp %arg2 : i32 to f32
      %cst_20 = arith.constant 1.000000e+00 : f32
      %36 = arith.addf %35, %cst_20 : f32
      %cst_21 = arith.constant 1.000000e+00 : f32
      %37 = arith.divf %cst_21, %36 : f32
      %c0_22 = arith.constant 0 : index
      %c0_23 = arith.constant 0 : index
      %38 = vector.load %arg11[%c0_22, %c0_23] : memref<64x1xf32, #tpu.memory_space<vmem>>, vector<64x1xf32>
      %39 = arith.subf %29, %38 : vector<64x1xf32>
      %c0_24 = arith.constant 0 : index
      %c0_25 = arith.constant 0 : index
      %40 = vector.load %arg11[%c0_24, %c0_25] : memref<64x1xf32, #tpu.memory_space<vmem>>, vector<64x1xf32>
      %41 = vector.broadcast %37 : f32 to vector<64x1xf32>
      %42 = arith.mulf %39, %41 : vector<64x1xf32>
      %43 = arith.addf %40, %42 : vector<64x1xf32>
      %c0_26 = arith.constant 0 : index
      %c0_27 = arith.constant 0 : index
      %44 = vector.load %arg11[%c0_26, %c0_27] : memref<64x1xf32, #tpu.memory_space<vmem>>, vector<64x1xf32>
      tpu.vector_store %arg11[%c0_26, %c0_27], %43 {strides = array<i32>} : memref<64x1xf32, #tpu.memory_space<vmem>>, vector<64x1xf32>,
      %c0_28 = arith.constant 0 : index
      %c0_29 = arith.constant 0 : index
      %45 = vector.load %arg12[%c0_28, %c0_29] : memref<64x1xf32, #tpu.memory_space<vmem>>, vector<64x1xf32>
      %46 = arith.addf %45, %34 : vector<64x1xf32>
      %47 = arith.mulf %39, %39 : vector<64x1xf32>
      %cst_30 = arith.constant 2.560000e+02 : f32
      %48 = arith.mulf %cst_30, %35 : f32
      %49 = arith.mulf %48, %37 : f32
      %50 = vector.broadcast %49 : f32 to vector<64x1xf32>
      %51 = arith.mulf %47, %50 : vector<64x1xf32>
      %52 = arith.addf %46, %51 : vector<64x1xf32>
      %c0_31 = arith.constant 0 : index
      %c0_32 = arith.constant 0 : index
      %53 = vector.load %arg12[%c0_31, %c0_32] : memref<64x1xf32, #tpu.memory_space<vmem>>, vector<64x1xf32>
      tpu.vector_store %arg12[%c0_31, %c0_32], %52 {strides = array<i32>} : memref<64x1xf32, #tpu.memory_space<vmem>>, vector<64x1xf32>,
    } else {
    }
    %c1_i32 = arith.constant 1 : i32
    %20 = arith.cmpi eq, %arg1, %c1_i32 : i32
    %21 = arith.extui %20 : i1 to i32
    %c0_i32_14 = arith.constant 0 : i32
    %22 = arith.cmpi ne, %21, %c0_i32_14 : i32
    scf.if %22 {
      %c0_15 = arith.constant 0 : index
      %c0_16 = arith.constant 0 : index
      %23 = vector.load %arg12[%c0_15, %c0_16] : memref<64x1xf32, #tpu.memory_space<vmem>>, vector<64x1xf32>
      %cst_17 = arith.constant 3.906250e-03 : f32
      %24 = vector.broadcast %cst_17 : f32 to vector<64x1xf32>
      %25 = arith.mulf %23, %24 : vector<64x1xf32>
      %cst_18 = arith.constant 9.99999974E-6 : f32
      %26 = vector.broadcast %cst_18 : f32 to vector<64x1xf32>
      %27 = arith.addf %25, %26 : vector<64x1xf32>
      %28 = math.rsqrt %27 : vector<64x1xf32>
      %c0_19 = arith.constant 0 : index
      %c0_20 = arith.constant 0 : index
      %29 = vector.load %arg11[%c0_19, %c0_20] : memref<64x1xf32, #tpu.memory_space<vmem>>, vector<64x1xf32>
      %30 = vector.broadcast %29 : vector<64x1xf32> to vector<64x256xf32>
      %31 = arith.subf %16, %30 : vector<64x256xf32>
      %32 = vector.broadcast %28 : vector<64x1xf32> to vector<64x256xf32>
      %33 = arith.mulf %31, %32 : vector<64x256xf32>
      %cst_21 = arith.constant 0.000000e+00 : f32
      %34 = vector.broadcast %cst_21 : f32 to vector<64x256xf32>
      %35 = arith.cmpf ogt, %33, %34 : vector<64x256xf32>
      %cst_22 = arith.constant 2.000000e-01 : f32
      %36 = vector.broadcast %cst_22 : f32 to vector<64x256xf32>
      %37 = arith.mulf %36, %33 : vector<64x256xf32>
      %38 = arith.select %35, %33, %37 : vector<64x256xi1>, vector<64x256xf32>
      %c0_23 = arith.constant 0 : index
      %c0_24 = arith.constant 0 : index
      %39 = vector.load %arg8[%c0_23, %c0_24] : memref<64x1xf32, #tpu.memory_space<vmem>>, vector<64x1xf32>
      %40 = vector.broadcast %39 : vector<64x1xf32> to vector<64x256xf32>
      %41 = arith.mulf %40, %38 : vector<64x256xf32>
      %cst_25 = arith.constant dense<0.000000e+00> : vector<256xf32>
      %42 = vector.multi_reduction <add>, %41, %cst_25 [0] : vector<64x256xf32> to vector<256xf32>
      %43 = vector.shape_cast %42 : vector<256xf32> to vector<1x256xf32>
      %c0_26 = arith.constant 0 : index
      %c0_27 = arith.constant 0 : index
      %44 = vector.load %arg9[%c0_26, %c0_27] : memref<1x1xf32, #tpu.memory_space<vmem>>, vector<1x1xf32>
      %45 = vector.broadcast %44 : vector<1x1xf32> to vector<1x256xf32>
      %46 = arith.addf %43, %45 : vector<1x256xf32>
      %c0_28 = arith.constant 0 : index
      %c0_29 = arith.constant 0 : index
      %c0_30 = arith.constant 0 : index
      %47 = vector.load %arg10[%c0_28, %c0_29, %c0_30] : memref<1x1x256xf32, #tpu.memory_space<vmem>>, vector<1x1x256xf32>
      %48 = vector.shape_cast %47 : vector<1x1x256xf32> to vector<1x256xf32>
      %49 = vector.shape_cast %46 : vector<1x256xf32> to vector<1x1x256xf32>
      tpu.vector_store %arg10[%c0_28, %c0_29, %c0_30], %49 {strides = array<i32>} : memref<1x1x256xf32, #tpu.memory_space<vmem>>, vector<1x1x256xf32>,
    } else {
    }
    return
  }
  func.func @transform_0(%arg0: i32, %arg1: i32, %arg2: i32) -> (i32, i32, i32) {
    %c0_i32 = arith.constant 0 : i32
    %c0_i32_0 = arith.constant 0 : i32
    return %arg0, %c0_i32, %arg2 : i32, i32, i32
  }
  func.func @transform_1(%arg0: i32, %arg1: i32, %arg2: i32) -> (i32, i32) {
    %c0_i32 = arith.constant 0 : i32
    %c0_i32_0 = arith.constant 0 : i32
    %c0_i32_1 = arith.constant 0 : i32
    return %c0_i32, %c0_i32_0 : i32, i32
  }
  func.func @transform_2(%arg0: i32, %arg1: i32, %arg2: i32) -> (i32, i32) {
    %c0_i32 = arith.constant 0 : i32
    %c0_i32_0 = arith.constant 0 : i32
    %c0_i32_1 = arith.constant 0 : i32
    return %c0_i32, %c0_i32_0 : i32, i32
  }
  func.func @transform_3(%arg0: i32, %arg1: i32, %arg2: i32) -> (i32, i32) {
    %c0_i32 = arith.constant 0 : i32
    %c0_i32_0 = arith.constant 0 : i32
    %c0_i32_1 = arith.constant 0 : i32
    return %c0_i32, %c0_i32_0 : i32, i32
  }
  func.func @transform_4(%arg0: i32, %arg1: i32, %arg2: i32) -> (i32, i32) {
    %c0_i32 = arith.constant 0 : i32
    %c0_i32_0 = arith.constant 0 : i32
    %c0_i32_1 = arith.constant 0 : i32
    return %c0_i32, %c0_i32_0 : i32, i32
  }
  func.func @transform_5(%arg0: i32, %arg1: i32, %arg2: i32) -> (i32, i32) {
    %c0_i32 = arith.constant 0 : i32
    %c0_i32_0 = arith.constant 0 : i32
    %c0_i32_1 = arith.constant 0 : i32
    return %c0_i32, %c0_i32_0 : i32, i32
  }
  func.func @transform_6(%arg0: i32, %arg1: i32, %arg2: i32) -> (i32, i32) {
    %c0_i32 = arith.constant 0 : i32
    %c0_i32_0 = arith.constant 0 : i32
    %c0_i32_1 = arith.constant 0 : i32
    return %c0_i32, %c0_i32_0 : i32, i32
  }
  func.func @transform_7(%arg0: i32, %arg1: i32, %arg2: i32) -> (i32, i32, i32) {
    %c0_i32 = arith.constant 0 : i32
    %c0_i32_0 = arith.constant 0 : i32
    return %arg0, %c0_i32, %arg2 : i32, i32, i32
  }
}

</mosaic_0001>

<llo_original>
// kernel: tpu_custom_call.1
$region0: #{tpu_custom_call.1}
  #allocation0 [shape = 'u32[]', space=smem, size = 0x4, offset = 0x4, fixed_abs, tag = 'smem constant byte address 0x4 - core index']
  #allocation1 [shape = 'u32[72,128]{1,0:T(1,128)}', space=vmem, size = 0x9000, scoped, tag = 'internal scratch']
  #allocation2 [shape = 'f32[64,1]{1,0:T(8,128)}', space=vmem, size = 0x8000, scoped, tag = 'scratch operand']
  #allocation3 [shape = 'f32[64,1]{1,0:T(8,128)}', space=vmem, size = 0x8000, scoped, tag = 'scratch operand']
  #allocation4 [shape = 'f32[1,1]{1,0:T(1,128)S(1)}', space=vmem, size = 0x200, scoped, tag = 'scoped memory for tpu_custom_call.1']
  %s0 = inlined_call_operand.vmem [shape: f32[2,4,256], index: 0, kind: input, shape index: {}]
  %s1 = inlined_call_operand.vmem [shape: f32[32,4], index: 1, kind: input, shape index: {}]
  %s2 = inlined_call_operand.vmem [shape: f32[32,1], index: 2, kind: input, shape index: {}]
  %s3 = inlined_call_operand.vmem [shape: f32[64,32], index: 3, kind: input, shape index: {}]
  %s4 = inlined_call_operand.vmem [shape: f32[64,1], index: 4, kind: input, shape index: {}]
  %s5 = inlined_call_operand.vmem [shape: f32[64,1], index: 5, kind: input, shape index: {}]
  %s6 = inlined_call_operand.<no memory space> [shape: f32[1,1], index: 6, kind: input, shape index: {}]
  %s7 = inlined_call_operand.hbm [shape: f32[2,1,256], index: 7, kind: output, shape index: {}]
  %s8 = sld [smem:[#allocation0]]
  $region73: #{tpu_custom_call.1} parent=0
    _
  %s10 = ssub.s32 1, %s8
  %s11 = scalar_select 0, %s10, %s8
  %v12 = vstv %s6
  %13 = vst [vmem:[#allocation4] sm:$0x1] %v12
  $region1: #{tpu_custom_call.1} parent=0
    #allocation5 [shape = 'u8[2048]{0}', space=vmem, size = 0x800, scoped, tag = 'output window, operand 0']
    #allocation6 [shape = 's32[2]{0}', space=sflag, size = 0x8, scoped, tag = 'scoped memory for tpu_custom_call.1']
    %14 = vsyncpa [#allocation6], 0
    %s15 = scalar_lea.sflag [#allocation6], 1
    %16 = vsyncpa %s15, 0
    loop: start=0, step=1, limit=6
    $region2: #{tpu_custom_call.1} parent=1 // loop_pre_header
      _
    $region3: #{tpu_custom_call.1} parent=1 // loop_header
      %s18 = sphi 0, %s22
      %p19 = scmp.ge.s32.totalorder %s18, 6
      %s25 = sphi 0, %s44
      %s26 = sphi 0, %s40
      %s27 = sphi 0, %s36
      %s28 = sphi 0, %s25
      %s29 = sphi 0, %s26
      %s30 = sphi 0, %s27
      %s31 = sphi 0, %s28
      %s32 = sphi 0, %s29
      %s33 = sphi 0, %s30
      %s49 = sphi 0, %s51
      %s52 = sphi 0, %s49
      %s53 = sphi 0, %s52
      %s69 = sphi 0, %s53
      %s73 = sphi 0, %s73
      %s75 = sphi 0, %s73
      %s76 = sphi 0, %s75
      %s90 = sphi 0, %s76
      %s94 = sphi 0, %s94
      %s96 = sphi 0, %s94
      %s97 = sphi 0, %s96
      %s111 = sphi 0, %s97
      %s115 = sphi 0, %s115
      %s117 = sphi 0, %s115
      %s118 = sphi 0, %s117
      %s132 = sphi 0, %s118
      %s136 = sphi 0, %s136
      %s138 = sphi 0, %s136
      %s139 = sphi 0, %s138
      %s153 = sphi 0, %s139
      %s157 = sphi 0, %s157
      %s159 = sphi 0, %s157
      %s160 = sphi 0, %s159
      %s174 = sphi 0, %s160
      %s178 = sphi 0, %s178
      %s180 = sphi 0, %s178
      %s181 = sphi 0, %s180
      %s195 = sphi 0, %s181
      %s203 = sphi 0, %s205
      %s206 = sphi 0, %s203
      %s207 = sphi 0, %s206
      %s223 = sphi 0, %s207
    $region4: #{tpu_custom_call.1} parent=1 // loop_header_branch
      %21 = sbr.rel (%p19) target = $region8
    $region5: #{tpu_custom_call.1} parent=1 // loop_body
      %s23 = ssub.s32 %s18, 1
      %s24 = ssub.s32 %s18, 2
      %s34 = sadd.s32 1, %s27
      %p35 = scmp.ge.s32.totalorder %s34, 1
      %s36 = scalar_select %p35, 0, %s34
      %s37 = sadd.s32 1, %s26
      %s38 = scalar_select %p35, %s37, %s26
      %p39 = scmp.ge.s32.totalorder %s38, 2
      %s40 = scalar_select %p39, 0, %s38
      %s41 = sadd.s32 1, %s25
      %s42 = scalar_select %p39, %s41, %s25
      %p43 = scmp.ge.s32.totalorder %s42, 2
      %s44 = scalar_select %p43, 0, %s42
      %s45 = ssub.s32 %s25, %s44
      %s46 = ssub.s32 %s27, %s36
      %s47 = sor.u32 %s45, %s46
      %p48 = scmp.eq.s32.totalorder %s47, 0
      %s50 = sadd.s32 %s49, 1
      %s51 = scalar_select %p48, %s49, %s50
      %p54 = pneg %p48
      %p55 = scmp.eq.s32.totalorder %s18, 3
      %p56 = por %p54, %p55
      %p57 = scmp.ne.s32.totalorder %s49, %s52
      %p58 = scmp.eq.s32.totalorder %s18, 0
      %p59 = por %p57, %p58
      %p60 = scmp.ne.s32.totalorder %s49, %s52
      %p61 = scmp.eq.s32.totalorder %s23, 3
      %p62 = por %p60, %p61
      %p63 = scmp.ne.s32.totalorder %s52, %s53
      %p64 = scmp.eq.s32.totalorder %s23, 0
      %p65 = por %p63, %p64
      %p66 = scmp.ne.s32.totalorder %s52, %s53
      %p67 = scmp.eq.s32.totalorder %s24, 3
      %p68 = por %p66, %p67
      %p70 = scmp.ne.s32.totalorder %s53, %s69
      %p71 = scmp.eq.s32.totalorder %s24, 0
      %p72 = por %p70, %p71
      %s74 = sadd.s32 %s73, 1
      %p77 = scmp.eq.s32.totalorder %s18, 3
      %p78 = scmp.ne.s32.totalorder %s73, %s75
      %p79 = scmp.eq.s32.totalorder %s18, 0
      %p80 = por %p78, %p79
      %p81 = scmp.ne.s32.totalorder %s73, %s75
      %p82 = scmp.eq.s32.totalorder %s23, 3
      %p83 = por %p81, %p82
      %p84 = scmp.ne.s32.totalorder %s75, %s76
      %p85 = scmp.eq.s32.totalorder %s23, 0
      %p86 = por %p84, %p85
      %p87 = scmp.ne.s32.totalorder %s75, %s76
      %p88 = scmp.eq.s32.totalorder %s24, 3
      %p89 = por %p87, %p88
      %p91 = scmp.ne.s32.totalorder %s76, %s90
      %p92 = scmp.eq.s32.totalorder %s24, 0
      %p93 = por %p91, %p92
      %s95 = sadd.s32 %s94, 1
      %p98 = scmp.eq.s32.totalorder %s18, 3
      %p99 = scmp.ne.s32.totalorder %s94, %s96
      %p100 = scmp.eq.s32.totalorder %s18, 0
      %p101 = por %p99, %p100
      %p102 = scmp.ne.s32.totalorder %s94, %s96
      %p103 = scmp.eq.s32.totalorder %s23, 3
      %p104 = por %p102, %p103
      %p105 = scmp.ne.s32.totalorder %s96, %s97
      %p106 = scmp.eq.s32.totalorder %s23, 0
      %p107 = por %p105, %p106
      %p108 = scmp.ne.s32.totalorder %s96, %s97
      %p109 = scmp.eq.s32.totalorder %s24, 3
      %p110 = por %p108, %p109
      %p112 = scmp.ne.s32.totalorder %s97, %s111
      %p113 = scmp.eq.s32.totalorder %s24, 0
      %p114 = por %p112, %p113
      %s116 = sadd.s32 %s115, 1
      %p119 = scmp.eq.s32.totalorder %s18, 3
      %p120 = scmp.ne.s32.totalorder %s115, %s117
      %p121 = scmp.eq.s32.totalorder %s18, 0
      %p122 = por %p120, %p121
      %p123 = scmp.ne.s32.totalorder %s115, %s117
      %p124 = scmp.eq.s32.totalorder %s23, 3
      %p125 = por %p123, %p124
      %p126 = scmp.ne.s32.totalorder %s117, %s118
      %p127 = scmp.eq.s32.totalorder %s23, 0
      %p128 = por %p126, %p127
      %p129 = scmp.ne.s32.totalorder %s117, %s118
      %p130 = scmp.eq.s32.totalorder %s24, 3
      %p131 = por %p129, %p130
      %p133 = scmp.ne.s32.totalorder %s118, %s132
      %p134 = scmp.eq.s32.totalorder %s24, 0
      %p135 = por %p133, %p134
      %s137 = sadd.s32 %s136, 1
      %p140 = scmp.eq.s32.totalorder %s18, 3
      %p141 = scmp.ne.s32.totalorder %s136, %s138
      %p142 = scmp.eq.s32.totalorder %s18, 0
      %p143 = por %p141, %p142
      %p144 = scmp.ne.s32.totalorder %s136, %s138
      %p145 = scmp.eq.s32.totalorder %s23, 3
      %p146 = por %p144, %p145
      %p147 = scmp.ne.s32.totalorder %s138, %s139
      %p148 = scmp.eq.s32.totalorder %s23, 0
      %p149 = por %p147, %p148
      %p150 = scmp.ne.s32.totalorder %s138, %s139
      %p151 = scmp.eq.s32.totalorder %s24, 3
      %p152 = por %p150, %p151
      %p154 = scmp.ne.s32.totalorder %s139, %s153
      %p155 = scmp.eq.s32.totalorder %s24, 0
      %p156 = por %p154, %p155
      %s158 = sadd.s32 %s157, 1
      %p161 = scmp.eq.s32.totalorder %s18, 3
      %p162 = scmp.ne.s32.totalorder %s157, %s159
      %p163 = scmp.eq.s32.totalorder %s18, 0
      %p164 = por %p162, %p163
      %p165 = scmp.ne.s32.totalorder %s157, %s159
      %p166 = scmp.eq.s32.totalorder %s23, 3
      %p167 = por %p165, %p166
      %p168 = scmp.ne.s32.totalorder %s159, %s160
      %p169 = scmp.eq.s32.totalorder %s23, 0
      %p170 = por %p168, %p169
      %p171 = scmp.ne.s32.totalorder %s159, %s160
      %p172 = scmp.eq.s32.totalorder %s24, 3
      %p173 = por %p171, %p172
      %p175 = scmp.ne.s32.totalorder %s160, %s174
      %p176 = scmp.eq.s32.totalorder %s24, 0
      %p177 = por %p175, %p176
      %s179 = sadd.s32 %s178, 1
      %p182 = scmp.eq.s32.totalorder %s18, 3
      %p183 = scmp.ne.s32.totalorder %s178, %s180
      %p184 = scmp.eq.s32.totalorder %s18, 0
      %p185 = por %p183, %p184
      %p186 = scmp.ne.s32.totalorder %s178, %s180
      %p187 = scmp.eq.s32.totalorder %s23, 3
      %p188 = por %p186, %p187
      %p189 = scmp.ne.s32.totalorder %s180, %s181
      %p190 = scmp.eq.s32.totalorder %s23, 0
      %p191 = por %p189, %p190
      %p192 = scmp.ne.s32.totalorder %s180, %s181
      %p193 = scmp.eq.s32.totalorder %s24, 3
      %p194 = por %p192, %p193
      %p196 = scmp.ne.s32.totalorder %s181, %s195
      %p197 = scmp.eq.s32.totalorder %s24, 0
      %p198 = por %p196, %p197
      %s199 = ssub.s32 %s25, %s44
      %s200 = ssub.s32 %s27, %s36
      %s201 = sor.u32 %s199, %s200
      %p202 = scmp.eq.s32.totalorder %s201, 0
      %s204 = sadd.s32 %s203, 1
      %s205 = scalar_select %p202, %s203, %s204
      %p208 = pneg %p202
      %p209 = scmp.eq.s32.totalorder %s18, 3
      %p210 = por %p208, %p209
      %p211 = scmp.ne.s32.totalorder %s203, %s206
      %p212 = scmp.eq.s32.totalorder %s18, 0
      %p213 = por %p211, %p212
      %p214 = scmp.ne.s32.totalorder %s203, %s206
      %p215 = scmp.eq.s32.totalorder %s23, 3
      %p216 = por %p214, %p215
      %p217 = scmp.ne.s32.totalorder %s206, %s207
      %p218 = scmp.eq.s32.totalorder %s23, 0
      %p219 = por %p217, %p218
      %p220 = scmp.ne.s32.totalorder %s206, %s207
      %p221 = scmp.eq.s32.totalorder %s24, 3
      %p222 = por %p220, %p221
      %p224 = scmp.ne.s32.totalorder %s207, %s223
      %p225 = scmp.eq.s32.totalorder %s24, 0
      %p226 = por %p224, %p225
      %p227 = scmp.le.s32.totalorder 1, %s18
      %p228 = scmp.lt.s32.totalorder %s18, 5
      %p229 = pnand %p227, %p228
      %p230 = pneg %p229
      // Predicated region
      $region9: #{tpu_custom_call.1} parent=5 // pred_check
        _
      $region10: #{tpu_custom_call.1} parent=5 // pred_check_branch
        %232 = sbr.rel (%p229) target = $region12
      $region11: #{tpu_custom_call.1} parent=5 // pred_region
        %s233 = ssub.s32 %s18, 1
        // Predicated region
        $region13: #{tpu_custom_call.1} parent=11 // pred_check
          %p234 = pneg %p86
        $region14: #{tpu_custom_call.1} parent=11 // pred_check_branch
          %236 = sbr.rel (%p234) target = $region16
        $region15: #{tpu_custom_call.1} parent=11 // pred_region
          _
        $region16: #{tpu_custom_call.1} parent=11 // pred_fallthru
          _
        // Predicated region
        $region17: #{tpu_custom_call.1} parent=11 // pred_check
          %p237 = pneg %p107
        $region18: #{tpu_custom_call.1} parent=11 // pred_check_branch
          %239 = sbr.rel (%p237) target = $region20
        $region19: #{tpu_custom_call.1} parent=11 // pred_region
          _
        $region20: #{tpu_custom_call.1} parent=11 // pred_fallthru
          _
        // Predicated region
        $region21: #{tpu_custom_call.1} parent=11 // pred_check
          %p240 = pneg %p128
        $region22: #{tpu_custom_call.1} parent=11 // pred_check_branch
          %242 = sbr.rel (%p240) target = $region24
        $region23: #{tpu_custom_call.1} parent=11 // pred_region
          _
        $region24: #{tpu_custom_call.1} parent=11 // pred_fallthru
          _
        // Predicated region
        $region25: #{tpu_custom_call.1} parent=11 // pred_check
          %p243 = pneg %p149
        $region26: #{tpu_custom_call.1} parent=11 // pred_check_branch
          %245 = sbr.rel (%p243) target = $region28
        $region27: #{tpu_custom_call.1} parent=11 // pred_region
          _
        $region28: #{tpu_custom_call.1} parent=11 // pred_fallthru
          _
        // Predicated region
        $region29: #{tpu_custom_call.1} parent=11 // pred_check
          %p246 = pneg %p170
        $region30: #{tpu_custom_call.1} parent=11 // pred_check_branch
          %248 = sbr.rel (%p246) target = $region32
        $region31: #{tpu_custom_call.1} parent=11 // pred_region
          _
        $region32: #{tpu_custom_call.1} parent=11 // pred_fallthru
          _
        // Predicated region
        $region33: #{tpu_custom_call.1} parent=11 // pred_check
          %p249 = pneg %p191
        $region34: #{tpu_custom_call.1} parent=11 // pred_check_branch
          %251 = sbr.rel (%p249) target = $region36
        $region35: #{tpu_custom_call.1} parent=11 // pred_region
          _
        $region36: #{tpu_custom_call.1} parent=11 // pred_fallthru
          _
      $region12: #{tpu_custom_call.1} parent=5 // pred_fallthru
        _
      %p252 = scmp.lt.s32.totalorder %s18, 4
      // Predicated region
      $region37: #{tpu_custom_call.1} parent=5 // pred_check
        %p253 = pneg %p252
      $region38: #{tpu_custom_call.1} parent=5 // pred_check_branch
        %255 = sbr.rel (%p253) target = $region40
      $region39: #{tpu_custom_call.1} parent=5 // pred_region
        // Predicated region
        $region41: #{tpu_custom_call.1} parent=39 // pred_check
          %p256 = pneg %p59
        $region42: #{tpu_custom_call.1} parent=39 // pred_check_branch
          %258 = sbr.rel (%p256) target = $region44
        $region43: #{tpu_custom_call.1} parent=39 // pred_region
          %s259 = smul.u32 2, %s27
          %p260 = scmp.lt.s32.totalorder %s25, 1
          %s261 = scalar_select %p260, %s25, 1
          %p262 = scmp.lt.s32.totalorder %s259, 1
          %s263 = scalar_select %p262, %s259, 1
          %s264 = smul.addr %s261, 2
          %s265 = sadd.s32 %s263, %s264
          %s266 = smul.addr %s265, 4
          %s267 = scalar_lea.vmem %s0, %s266
          %s268 = smul.u32 2, %s27
        $region44: #{tpu_custom_call.1} parent=39 // pred_fallthru
          _
      $region40: #{tpu_custom_call.1} parent=5 // pred_fallthru
        _
      %p269 = scmp.le.s32.totalorder 1, %s18
      %p270 = scmp.lt.s32.totalorder %s18, 5
      %p271 = pnand %p269, %p270
      %p272 = pneg %p271
      // Predicated region
      $region45: #{tpu_custom_call.1} parent=5 // pred_check
        _
      $region46: #{tpu_custom_call.1} parent=5 // pred_check_branch
        %274 = sbr.rel (%p271) target = $region48
      $region47: #{tpu_custom_call.1} parent=5 // pred_region
        %s275 = ssub.s32 %s18, 1
        %s276 = smul.u32 2, %s30
        %p277 = scmp.lt.s32.totalorder %s28, 1
        %s278 = scalar_select %p277, %s28, 1
        %p279 = scmp.lt.s32.totalorder %s276, 1
        %s280 = scalar_select %p279, %s276, 1
        %s281 = smul.addr %s278, 2
        %s282 = sadd.s32 %s280, %s281
        %s283 = smul.addr %s282, 4
        %s284 = scalar_lea.vmem %s0, %s283
        %p285 = pneg %p65
        %p286 = pneg %p62
        %p287 = pneg %p86
        %p288 = pneg %p83
        %p289 = pneg %p107
        %p290 = pneg %p104
        %p291 = pneg %p128
        %p292 = pneg %p125
        %p293 = pneg %p149
        %p294 = pneg %p146
        %p295 = pneg %p170
        %p296 = pneg %p167
        %p297 = pneg %p191
        %p298 = pneg %p188
        %p299 = pneg %p219
        %p300 = pneg %p216
        %s301 = sand.u32 %s206, 1
        %s302 = scalar_lea.sflag [#allocation6], %s301
        %s303 = sand.u32 %s206, 1
        %s304 = smul.addr %s303, 2
        %s305 = scalar_lea.vmem [#allocation5], %s304
        %s306 = smul.u32 2, %s30
        %p307 = scmp.lt.s32.totalorder %s28, 1
        %s308 = scalar_select %p307, %s28, 1
        %p309 = scmp.lt.s32.totalorder %s306, 1
        %s310 = scalar_select %p309, %s306, 1
        %s311 = smul.addr %s308, 2
        %s312 = sadd.s32 %s310, %s311
        %s313 = smul.addr %s312, 4
        %s314 = scalar_lea.vmem %s0, %s313
        %s315 = smul.u32 2, %s30
        %s316 = smul.u32 2, %s30
        %v317 = vld [vmem:[%s314] sm:$0xff]
        %v318 = vld [vmem:[%s1] sm:$0xff]
        %v319 = vld [vmem:[%s1 + $0x8] sm:$0xff]
        %v320 = vld [vmem:[%s1 + $0x10] sm:$0xff]
        %v321 = vld [vmem:[%s1 + $0x18] sm:$0xff]
        %v322 = vld [vmem:[%s2] sm:$0xff]
        %v323 = vld [vmem:[%s2 + $0x8] sm:$0xff]
        %v324 = vld [vmem:[%s2 + $0x10] sm:$0xff]
        %v325 = vld [vmem:[%s2 + $0x18] sm:$0xff]
        %327 = vset.pattern.permute.xlu0 0
        %328 = vperm.xlu0 %327, %v322
        %v329 = vpop.permute.xlu0 %328
        %332 = vset.pattern.permute.xlu0 0
        %333 = vperm.xlu0 %332, %v323
        %v334 = vpop.permute.xlu0 %333
        %337 = vset.pattern.permute.xlu0 0
        %338 = vperm.xlu0 %337, %v324
        %v339 = vpop.permute.xlu0 %338
        %342 = vset.pattern.permute.xlu0 0
        %343 = vperm.xlu0 %342, %v325
        %v344 = vpop.permute.xlu0 %343
        %347 = vst [vmem:[#allocation1] ss:$2 sm:$0xff] %v317
        %v348 = vld.sshfl [vmem:[#allocation1] sm:$0xff pattern:$0x75316420]
        %v349 = vld.sshfl [vmem:[#allocation1 + $0x8] sm:$0xff pattern:$0x75316420]
        %vm350 = vcmask 31744
        %v352 = vsel %vm350, %v318, 0
        %v355 = vsel %vm350, %v319, 0
        %v358 = vsel %vm350, %v320, 0
        %v361 = vsel %vm350, %v321, 0
        %vm363 = vcmask 1043456
        %v364 = vsel %vm363, %v348, 0
        %v366 = vsel %vm363, %v349, 0
        %368 = vmatpush.msra.mxu0 0.0
        %369 = vmatpush.msra.mxu0 0.0
        %370 = vmatpush.msra.mxu0 0.0
        %371 = vmatpush.msra.mxu0 0.0
        %372 = vmatpush.msra.mxu0 0.0
        %373 = vmatpush.msra.mxu0 0.0
        %374 = vmatpush.msra.mxu0 0.0
        %375 = vmatpush.msra.mxu0 0.0
        %376 = vmatpush.msra.mxu0 0.0
        %377 = vmatpush.msra.mxu0 0.0
        %378 = vmatpush.msra.mxu0 0.0
        %379 = vmatpush.msra.mxu0 0.0
        %380 = vmatpush.msra.mxu0 0.0
        %381 = vmatpush.msra.mxu0 0.0
        %382 = vmatpush.msra.mxu0 0.0
        %383 = vmatpush.msra.mxu0 %v364
        %384 = vmatmul.f32.gmra.mxu0 %v352
        %v385 = vpop.f32.mrf.mxu0
        %v386 = vadd.f32 %v329, %v385
        %387 = vmatmul.f32.gmra.mxu0 %v355
        %v388 = vpop.f32.mrf.mxu0
        %v389 = vadd.f32 %v334, %v388
        %390 = vmatmul.f32.gmra.mxu0 %v358
        %v391 = vpop.f32.mrf.mxu0
        %v392 = vadd.f32 %v339, %v391
        %393 = vmatmul.f32.gmra.mxu0 %v361
        %v394 = vpop.f32.mrf.mxu0
        %v395 = vadd.f32 %v344, %v394
        %396 = vdwg.mxu0
        %397 = vmatpush.msra.mxu0 0.0
        %398 = vmatpush.msra.mxu0 0.0
        %399 = vmatpush.msra.mxu0 0.0
        %400 = vmatpush.msra.mxu0 0.0
        %401 = vmatpush.msra.mxu0 0.0
        %402 = vmatpush.msra.mxu0 0.0
        %403 = vmatpush.msra.mxu0 0.0
        %404 = vmatpush.msra.mxu0 0.0
        %405 = vmatpush.msra.mxu0 0.0
        %406 = vmatpush.msra.mxu0 0.0
        %407 = vmatpush.msra.mxu0 0.0
        %408 = vmatpush.msra.mxu0 0.0
        %409 = vmatpush.msra.mxu0 0.0
        %410 = vmatpush.msra.mxu0 0.0
        %411 = vmatpush.msra.mxu0 0.0
        %412 = vmatpush.msra.mxu0 %v366
        %413 = vmatmul.f32.gmra.mxu0 %v352
        %v414 = vpop.f32.mrf.mxu0
        %v415 = vadd.f32 %v329, %v414
        %416 = vmatmul.f32.gmra.mxu0 %v355
        %v417 = vpop.f32.mrf.mxu0
        %v418 = vadd.f32 %v334, %v417
        %419 = vmatmul.f32.gmra.mxu0 %v358
        %v420 = vpop.f32.mrf.mxu0
        %v421 = vadd.f32 %v339, %v420
        %422 = vmatmul.f32.gmra.mxu0 %v361
        %v423 = vpop.f32.mrf.mxu0
        %v424 = vadd.f32 %v344, %v423
        %425 = vdwg.mxu0
        %vm426 = vcmp.gt.f32.partialorder %v386, 0.0
        %vm427 = vcmp.gt.f32.partialorder %v415, 0.0
        %vm428 = vcmp.gt.f32.partialorder %v389, 0.0
        %vm429 = vcmp.gt.f32.partialorder %v418, 0.0
        %vm430 = vcmp.gt.f32.partialorder %v392, 0.0
        %vm431 = vcmp.gt.f32.partialorder %v421, 0.0
        %vm432 = vcmp.gt.f32.partialorder %v395, 0.0
        %vm433 = vcmp.gt.f32.partialorder %v424, 0.0
        %v434 = vmul.f32 %v386, 0.2
        %v435 = vmul.f32 %v415, 0.2
        %v436 = vmul.f32 %v389, 0.2
        %v437 = vmul.f32 %v418, 0.2
        %v438 = vmul.f32 %v392, 0.2
        %v439 = vmul.f32 %v421, 0.2
        %v440 = vmul.f32 %v395, 0.2
        %v441 = vmul.f32 %v424, 0.2
        %v442 = vsel %vm426, %v386, %v434
        %v443 = vsel %vm427, %v415, %v435
        %v444 = vsel %vm428, %v389, %v436
        %v445 = vsel %vm429, %v418, %v437
        %v446 = vsel %vm430, %v392, %v438
        %v447 = vsel %vm431, %v421, %v439
        %v448 = vsel %vm432, %v395, %v440
        %v449 = vsel %vm433, %v424, %v441
        %v450 = vld [vmem:[%s3] sm:$0xff]
        %v451 = vld [vmem:[%s3 + $0x8] sm:$0xff]
        %v452 = vld [vmem:[%s3 + $0x10] sm:$0xff]
        %v453 = vld [vmem:[%s3 + $0x18] sm:$0xff]
        %v454 = vld [vmem:[%s3 + $0x20] sm:$0xff]
        %v455 = vld [vmem:[%s3 + $0x28] sm:$0xff]
        %v456 = vld [vmem:[%s3 + $0x30] sm:$0xff]
        %v457 = vld [vmem:[%s3 + $0x38] sm:$0xff]
        %v458 = vld [vmem:[%s4] sm:$0xff]
        %v459 = vld [vmem:[%s4 + $0x8] sm:$0xff]
        %v460 = vld [vmem:[%s4 + $0x10] sm:$0xff]
        %v461 = vld [vmem:[%s4 + $0x18] sm:$0xff]
        %v462 = vld [vmem:[%s4 + $0x20] sm:$0xff]
        %v463 = vld [vmem:[%s4 + $0x28] sm:$0xff]
        %v464 = vld [vmem:[%s4 + $0x30] sm:$0xff]
        %v465 = vld [vmem:[%s4 + $0x38] sm:$0xff]
        %467 = vset.pattern.permute.xlu0 0
        %468 = vperm.xlu0 %467, %v458
        %v469 = vpop.permute.xlu0 %468
        %472 = vset.pattern.permute.xlu0 0
        %473 = vperm.xlu0 %472, %v459
        %v474 = vpop.permute.xlu0 %473
        %477 = vset.pattern.permute.xlu0 0
        %478 = vperm.xlu0 %477, %v460
        %v479 = vpop.permute.xlu0 %478
        %482 = vset.pattern.permute.xlu0 0
        %483 = vperm.xlu0 %482, %v461
        %v484 = vpop.permute.xlu0 %483
        %487 = vset.pattern.permute.xlu0 0
        %488 = vperm.xlu0 %487, %v462
        %v489 = vpop.permute.xlu0 %488
        %492 = vset.pattern.permute.xlu0 0
        %493 = vperm.xlu0 %492, %v463
        %v494 = vpop.permute.xlu0 %493
        %497 = vset.pattern.permute.xlu0 0
        %498 = vperm.xlu0 %497, %v464
        %v499 = vpop.permute.xlu0 %498
        %502 = vset.pattern.permute.xlu0 0
        %503 = vperm.xlu0 %502, %v465
        %v504 = vpop.permute.xlu0 %503
        %vm506 = vcmask 261120
        %v508 = vsel %vm506, %v450, 0
        %v511 = vsel %vm506, %v451, 0
        %v514 = vsel %vm506, %v452, 0
        %v517 = vsel %vm506, %v453, 0
        %v520 = vsel %vm506, %v454, 0
        %v523 = vsel %vm506, %v455, 0
        %v526 = vsel %vm506, %v456, 0
        %v529 = vsel %vm506, %v457, 0
        %531 = vmatpush.msra.mxu0 0.0
        %532 = vmatpush.msra.mxu0 0.0
        %533 = vmatpush.msra.mxu0 0.0
        %534 = vmatpush.msra.mxu0 0.0
        %535 = vmatpush.msra.mxu0 0.0
        %536 = vmatpush.msra.mxu0 0.0
        %537 = vmatpush.msra.mxu0 0.0
        %538 = vmatpush.msra.mxu0 0.0
        %539 = vmatpush.msra.mxu0 0.0
        %540 = vmatpush.msra.mxu0 0.0
        %541 = vmatpush.msra.mxu0 0.0
        %542 = vmatpush.msra.mxu0 0.0
        %543 = vmatpush.msra.mxu0 %v448
        %544 = vmatpush.msra.mxu0 %v446
        %545 = vmatpush.msra.mxu0 %v444
        %546 = vmatpush.msra.mxu0 %v442
        %547 = vmatmul.f32.gmra.mxu0 %v508
        %v548 = vpop.f32.mrf.mxu0
        %v549 = vadd.f32 %v469, %v548
        %550 = vmatmul.f32.gmra.mxu0 %v511
        %v551 = vpop.f32.mrf.mxu0
        %v552 = vadd.f32 %v474, %v551
        %553 = vmatmul.f32.gmra.mxu0 %v514
        %v554 = vpop.f32.mrf.mxu0
        %v555 = vadd.f32 %v479, %v554
        %556 = vmatmul.f32.gmra.mxu0 %v517
        %v557 = vpop.f32.mrf.mxu0
        %v558 = vadd.f32 %v484, %v557
        %559 = vmatmul.f32.gmra.mxu0 %v520
        %v560 = vpop.f32.mrf.mxu0
        %v561 = vadd.f32 %v489, %v560
        %562 = vmatmul.f32.gmra.mxu0 %v523
        %v563 = vpop.f32.mrf.mxu0
        %v564 = vadd.f32 %v494, %v563
        %565 = vmatmul.f32.gmra.mxu0 %v526
        %v566 = vpop.f32.mrf.mxu0
        %v567 = vadd.f32 %v499, %v566
        %568 = vmatmul.f32.gmra.mxu0 %v529
        %v569 = vpop.f32.mrf.mxu0
        %v570 = vadd.f32 %v504, %v569
        %571 = vdwg.mxu0
        %572 = vmatpush.msra.mxu0 0.0
        %573 = vmatpush.msra.mxu0 0.0
        %574 = vmatpush.msra.mxu0 0.0
        %575 = vmatpush.msra.mxu0 0.0
        %576 = vmatpush.msra.mxu0 0.0
        %577 = vmatpush.msra.mxu0 0.0
        %578 = vmatpush.msra.mxu0 0.0
        %579 = vmatpush.msra.mxu0 0.0
        %580 = vmatpush.msra.mxu0 0.0
        %581 = vmatpush.msra.mxu0 0.0
        %582 = vmatpush.msra.mxu0 0.0
        %583 = vmatpush.msra.mxu0 0.0
        %584 = vmatpush.msra.mxu0 %v449
        %585 = vmatpush.msra.mxu0 %v447
        %586 = vmatpush.msra.mxu0 %v445
        %587 = vmatpush.msra.mxu0 %v443
        %588 = vmatmul.f32.gmra.mxu0 %v508
        %v589 = vpop.f32.mrf.mxu0
        %v590 = vadd.f32 %v469, %v589
        %591 = vmatmul.f32.gmra.mxu0 %v511
        %v592 = vpop.f32.mrf.mxu0
        %v593 = vadd.f32 %v474, %v592
        %594 = vmatmul.f32.gmra.mxu0 %v514
        %v595 = vpop.f32.mrf.mxu0
        %v596 = vadd.f32 %v479, %v595
        %597 = vmatmul.f32.gmra.mxu0 %v517
        %v598 = vpop.f32.mrf.mxu0
        %v599 = vadd.f32 %v484, %v598
        %600 = vmatmul.f32.gmra.mxu0 %v520
        %v601 = vpop.f32.mrf.mxu0
        %v602 = vadd.f32 %v489, %v601
        %603 = vmatmul.f32.gmra.mxu0 %v523
        %v604 = vpop.f32.mrf.mxu0
        %v605 = vadd.f32 %v494, %v604
        %606 = vmatmul.f32.gmra.mxu0 %v526
        %v607 = vpop.f32.mrf.mxu0
        %v608 = vadd.f32 %v499, %v607
        %609 = vmatmul.f32.gmra.mxu0 %v529
        %v610 = vpop.f32.mrf.mxu0
        %v611 = vadd.f32 %v504, %v610
        %612 = vdwg.mxu0
        %p613 = scmp.eq.s32.totalorder %s29, 0
        // Predicated region
        $region49: #{tpu_custom_call.1} parent=47 // pred_check
          %p614 = pneg %p613
        $region50: #{tpu_custom_call.1} parent=47 // pred_check_branch
          %616 = sbr.rel (%p614) target = $region52
        $region51: #{tpu_custom_call.1} parent=47 // pred_region
          %p617 = scmp.eq.s32.totalorder %s30, 0
          // Predicated region
          $region53: #{tpu_custom_call.1} parent=51 // pred_check
            %p618 = pneg %p617
          $region54: #{tpu_custom_call.1} parent=51 // pred_check_branch
            %620 = sbr.rel (%p618) target = $region56
          $region55: #{tpu_custom_call.1} parent=51 // pred_region
            %vm621 = vcmask 7168
            %622 = vst.msk [vmem:[#allocation2] sm:$0xff] %vm621, 0.0
            %623 = vst.msk [vmem:[#allocation2 + $0x8] sm:$0xff] %vm621, 0.0
            %624 = vst.msk [vmem:[#allocation2 + $0x10] sm:$0xff] %vm621, 0.0
            %625 = vst.msk [vmem:[#allocation2 + $0x18] sm:$0xff] %vm621, 0.0
            %626 = vst.msk [vmem:[#allocation2 + $0x20] sm:$0xff] %vm621, 0.0
            %627 = vst.msk [vmem:[#allocation2 + $0x28] sm:$0xff] %vm621, 0.0
            %628 = vst.msk [vmem:[#allocation2 + $0x30] sm:$0xff] %vm621, 0.0
            %629 = vst.msk [vmem:[#allocation2 + $0x38] sm:$0xff] %vm621, 0.0
            %630 = vst.msk [vmem:[#allocation3] sm:$0xff] %vm621, 0.0
            %631 = vst.msk [vmem:[#allocation3 + $0x8] sm:$0xff] %vm621, 0.0
            %632 = vst.msk [vmem:[#allocation3 + $0x10] sm:$0xff] %vm621, 0.0
            %633 = vst.msk [vmem:[#allocation3 + $0x18] sm:$0xff] %vm621, 0.0
            %634 = vst.msk [vmem:[#allocation3 + $0x20] sm:$0xff] %vm621, 0.0
            %635 = vst.msk [vmem:[#allocation3 + $0x28] sm:$0xff] %vm621, 0.0
            %636 = vst.msk [vmem:[#allocation3 + $0x30] sm:$0xff] %vm621, 0.0
            %637 = vst.msk [vmem:[#allocation3 + $0x38] sm:$0xff] %vm621, 0.0
          $region56: #{tpu_custom_call.1} parent=51 // pred_fallthru
            _
          %v638 = vadd.f32 %v549, %v590
          %639 = vadd.xlane.f32.xlu0 %v638
          %v640 = vpop.xlane.xlu0 %639
          %v641 = vadd.f32 %v552, %v593
          %642 = vadd.xlane.f32.xlu0 %v641
          %v643 = vpop.xlane.xlu0 %642
          %v644 = vadd.f32 %v555, %v596
          %645 = vadd.xlane.f32.xlu0 %v644
          %v646 = vpop.xlane.xlu0 %645
          %v647 = vadd.f32 %v558, %v599
          %648 = vadd.xlane.f32.xlu0 %v647
          %v649 = vpop.xlane.xlu0 %648
          %v650 = vadd.f32 %v561, %v602
          %651 = vadd.xlane.f32.xlu0 %v650
          %v652 = vpop.xlane.xlu0 %651
          %v653 = vadd.f32 %v564, %v605
          %654 = vadd.xlane.f32.xlu0 %v653
          %v655 = vpop.xlane.xlu0 %654
          %v656 = vadd.f32 %v567, %v608
          %657 = vadd.xlane.f32.xlu0 %v656
          %v658 = vpop.xlane.xlu0 %657
          %v659 = vadd.f32 %v570, %v611
          %660 = vadd.xlane.f32.xlu0 %v659
          %v661 = vpop.xlane.xlu0 %660
          %v662 = vrcp.pop 256.0
          %v663 = vmul.f32 256.0, %v662
          %v664 = vsub.f32 1.0, %v663
          %v665 = vmul.f32 %v662, %v664
          %v666 = vadd.f32 %v662, %v665
          %vm667 = vweird.f32 %v662
          %v668 = vsel %vm667, %v662, %v666
          %v669 = vmul.f32 %v640, %v668
          %v670 = vmul.f32 %v643, %v668
          %v671 = vmul.f32 %v646, %v668
          %v672 = vmul.f32 %v649, %v668
          %v673 = vmul.f32 %v652, %v668
          %v674 = vmul.f32 %v655, %v668
          %v675 = vmul.f32 %v658, %v668
          %v676 = vmul.f32 %v661, %v668
          %v677 = vsub.f32 %v549, %v669
          %v678 = vsub.f32 %v590, %v669
          %v679 = vsub.f32 %v552, %v670
          %v680 = vsub.f32 %v593, %v670
          %v681 = vsub.f32 %v555, %v671
          %v682 = vsub.f32 %v596, %v671
          %v683 = vsub.f32 %v558, %v672
          %v684 = vsub.f32 %v599, %v672
          %v685 = vsub.f32 %v561, %v673
          %v686 = vsub.f32 %v602, %v673
          %v687 = vsub.f32 %v564, %v674
          %v688 = vsub.f32 %v605, %v674
          %v689 = vsub.f32 %v567, %v675
          %v690 = vsub.f32 %v608, %v675
          %v691 = vsub.f32 %v570, %v676
          %v692 = vsub.f32 %v611, %v676
          %v693 = vmul.f32 %v677, %v677
          %v694 = vmul.f32 %v678, %v678
          %v695 = vmul.f32 %v679, %v679
          %v696 = vmul.f32 %v680, %v680
          %v697 = vmul.f32 %v681, %v681
          %v698 = vmul.f32 %v682, %v682
          %v699 = vmul.f32 %v683, %v683
          %v700 = vmul.f32 %v684, %v684
          %v701 = vmul.f32 %v685, %v685
          %v702 = vmul.f32 %v686, %v686
          %v703 = vmul.f32 %v687, %v687
          %v704 = vmul.f32 %v688, %v688
          %v705 = vmul.f32 %v689, %v689
          %v706 = vmul.f32 %v690, %v690
          %v707 = vmul.f32 %v691, %v691
          %v708 = vmul.f32 %v692, %v692
          %v709 = vadd.f32 %v693, %v694
          %710 = vadd.xlane.f32.xlu0 %v709
          %v711 = vpop.xlane.xlu0 %710
          %v712 = vadd.f32 %v695, %v696
          %713 = vadd.xlane.f32.xlu0 %v712
          %v714 = vpop.xlane.xlu0 %713
          %v715 = vadd.f32 %v697, %v698
          %716 = vadd.xlane.f32.xlu0 %v715
          %v717 = vpop.xlane.xlu0 %716
          %v718 = vadd.f32 %v699, %v700
          %719 = vadd.xlane.f32.xlu0 %v718
          %v720 = vpop.xlane.xlu0 %719
          %v721 = vadd.f32 %v701, %v702
          %722 = vadd.xlane.f32.xlu0 %v721
          %v723 = vpop.xlane.xlu0 %722
          %v724 = vadd.f32 %v703, %v704
          %725 = vadd.xlane.f32.xlu0 %v724
          %v726 = vpop.xlane.xlu0 %725
          %v727 = vadd.f32 %v705, %v706
          %728 = vadd.xlane.f32.xlu0 %v727
          %v729 = vpop.xlane.xlu0 %728
          %v730 = vadd.f32 %v707, %v708
          %731 = vadd.xlane.f32.xlu0 %v730
          %v732 = vpop.xlane.xlu0 %731
          %s733 = scvt.s32.f32 %s30
          %s734 = sadd.f32 %s733, 1.0
          %v735 = vstv %s734
          %v736 = vrcp.pop %v735
          %v737 = vmul.f32 %v735, %v736
          %v738 = vsub.f32 1.0, %v737
          %v739 = vmul.f32 %v736, %v738
          %v740 = vadd.f32 %v736, %v739
          %vm741 = vweird.f32 %v735
          %vm742 = vweird.f32 %v736
          %vm743 = vmor %vm741, %vm742
          %v744 = vsel %vm743, %v736, %v740
          %v745 = vand.u32 2147483647, %v735
          %vm746 = vcmp.eq.f32.partialorder %v745, 8.507059e+37
          %v747 = vand.u32 %v735, 2147483648
          %v748 = vor.u32 1.1754944e-38, %v747
          %v749 = vsel %vm746, %v748, %v744
          %s750 = vtos %v749
          %v751 = vld [vmem:[#allocation2] sm:$0xff]
          %v752 = vld [vmem:[#allocation2 + $0x8] sm:$0xff]
          %v753 = vld [vmem:[#allocation2 + $0x10] sm:$0xff]
          %v754 = vld [vmem:[#allocation2 + $0x18] sm:$0xff]
          %v755 = vld [vmem:[#allocation2 + $0x20] sm:$0xff]
          %v756 = vld [vmem:[#allocation2 + $0x28] sm:$0xff]
          %v757 = vld [vmem:[#allocation2 + $0x30] sm:$0xff]
          %v758 = vld [vmem:[#allocation2 + $0x38] sm:$0xff]
          %v759 = vsub.f32 %v669, %v751
          %v760 = vsub.f32 %v670, %v752
          %v761 = vsub.f32 %v671, %v753
          %v762 = vsub.f32 %v672, %v754
          %v763 = vsub.f32 %v673, %v755
          %v764 = vsub.f32 %v674, %v756
          %v765 = vsub.f32 %v675, %v757
          %v766 = vsub.f32 %v676, %v758
          %v767 = vstv %s750
          %v768 = vmul.f32 %v759, %v767
          %v769 = vmul.f32 %v760, %v767
          %v770 = vmul.f32 %v761, %v767
          %v771 = vmul.f32 %v762, %v767
          %v772 = vmul.f32 %v763, %v767
          %v773 = vmul.f32 %v764, %v767
          %v774 = vmul.f32 %v765, %v767
          %v775 = vmul.f32 %v766, %v767
          %v776 = vadd.f32 %v751, %v768
          %v777 = vadd.f32 %v752, %v769
          %v778 = vadd.f32 %v753, %v770
          %v779 = vadd.f32 %v754, %v771
          %v780 = vadd.f32 %v755, %v772
          %v781 = vadd.f32 %v756, %v773
          %v782 = vadd.f32 %v757, %v774
          %v783 = vadd.f32 %v758, %v775
          %vm784 = vcmask 7168
          %785 = vst.msk [vmem:[#allocation2] sm:$0xff] %vm784, %v776
          %786 = vst.msk [vmem:[#allocation2 + $0x8] sm:$0xff] %vm784, %v777
          %787 = vst.msk [vmem:[#allocation2 + $0x10] sm:$0xff] %vm784, %v778
          %788 = vst.msk [vmem:[#allocation2 + $0x18] sm:$0xff] %vm784, %v779
          %789 = vst.msk [vmem:[#allocation2 + $0x20] sm:$0xff] %vm784, %v780
          %790 = vst.msk [vmem:[#allocation2 + $0x28] sm:$0xff] %vm784, %v781
          %791 = vst.msk [vmem:[#allocation2 + $0x30] sm:$0xff] %vm784, %v782
          %792 = vst.msk [vmem:[#allocation2 + $0x38] sm:$0xff] %vm784, %v783
          %v793 = vld [vmem:[#allocation3] sm:$0xff]
          %v794 = vld [vmem:[#allocation3 + $0x8] sm:$0xff]
          %v795 = vld [vmem:[#allocation3 + $0x10] sm:$0xff]
          %v796 = vld [vmem:[#allocation3 + $0x18] sm:$0xff]
          %v797 = vld [vmem:[#allocation3 + $0x20] sm:$0xff]
          %v798 = vld [vmem:[#allocation3 + $0x28] sm:$0xff]
          %v799 = vld [vmem:[#allocation3 + $0x30] sm:$0xff]
          %v800 = vld [vmem:[#allocation3 + $0x38] sm:$0xff]
          %v801 = vadd.f32 %v793, %v711
          %v802 = vadd.f32 %v794, %v714
          %v803 = vadd.f32 %v795, %v717
          %v804 = vadd.f32 %v796, %v720
          %v805 = vadd.f32 %v797, %v723
          %v806 = vadd.f32 %v798, %v726
          %v807 = vadd.f32 %v799, %v729
          %v808 = vadd.f32 %v800, %v732
          %v809 = vmul.f32 %v759, %v759
          %v810 = vmul.f32 %v760, %v760
          %v811 = vmul.f32 %v761, %v761
          %v812 = vmul.f32 %v762, %v762
          %v813 = vmul.f32 %v763, %v763
          %v814 = vmul.f32 %v764, %v764
          %v815 = vmul.f32 %v765, %v765
          %v816 = vmul.f32 %v766, %v766
          %s817 = smul.f32 %s733, 256.0
          %s818 = smul.f32 %s817, %s750
          %v819 = vstv %s818
          %v820 = vmul.f32 %v809, %v819
          %v821 = vmul.f32 %v810, %v819
          %v822 = vmul.f32 %v811, %v819
          %v823 = vmul.f32 %v812, %v819
          %v824 = vmul.f32 %v813, %v819
          %v825 = vmul.f32 %v814, %v819
          %v826 = vmul.f32 %v815, %v819
          %v827 = vmul.f32 %v816, %v819
          %v828 = vadd.f32 %v801, %v820
          %v829 = vadd.f32 %v802, %v821
          %v830 = vadd.f32 %v803, %v822
          %v831 = vadd.f32 %v804, %v823
          %v832 = vadd.f32 %v805, %v824
          %v833 = vadd.f32 %v806, %v825
          %v834 = vadd.f32 %v807, %v826
          %v835 = vadd.f32 %v808, %v827
          %836 = vst.msk [vmem:[#allocation3] sm:$0xff] %vm784, %v828
          %837 = vst.msk [vmem:[#allocation3 + $0x8] sm:$0xff] %vm784, %v829
          %838 = vst.msk [vmem:[#allocation3 + $0x10] sm:$0xff] %vm784, %v830
          %839 = vst.msk [vmem:[#allocation3 + $0x18] sm:$0xff] %vm784, %v831
          %840 = vst.msk [vmem:[#allocation3 + $0x20] sm:$0xff] %vm784, %v832
          %841 = vst.msk [vmem:[#allocation3 + $0x28] sm:$0xff] %vm784, %v833
          %842 = vst.msk [vmem:[#allocation3 + $0x30] sm:$0xff] %vm784, %v834
          %843 = vst.msk [vmem:[#allocation3 + $0x38] sm:$0xff] %vm784, %v835
        $region52: #{tpu_custom_call.1} parent=47 // pred_fallthru
          _
        %p844 = scmp.eq.s32.totalorder %s29, 1
        // Predicated region
        $region57: #{tpu_custom_call.1} parent=47 // pred_check
          %p845 = pneg %p844
        $region58: #{tpu_custom_call.1} parent=47 // pred_check_branch
          %847 = sbr.rel (%p845) target = $region60
        $region59: #{tpu_custom_call.1} parent=47 // pred_region
          %v848 = vld [vmem:[#allocation3] sm:$0xff]
          %v849 = vld [vmem:[#allocation3 + $0x8] sm:$0xff]
          %v850 = vld [vmem:[#allocation3 + $0x10] sm:$0xff]
          %v851 = vld [vmem:[#allocation3 + $0x18] sm:$0xff]
          %v852 = vld [vmem:[#allocation3 + $0x20] sm:$0xff]
          %v853 = vld [vmem:[#allocation3 + $0x28] sm:$0xff]
          %v854 = vld [vmem:[#allocation3 + $0x30] sm:$0xff]
          %v855 = vld [vmem:[#allocation3 + $0x38] sm:$0xff]
          %v856 = vmul.f32 %v848, 0.00390625
          %v857 = vmul.f32 %v849, 0.00390625
          %v858 = vmul.f32 %v850, 0.00390625
          %v859 = vmul.f32 %v851, 0.00390625
          %v860 = vmul.f32 %v852, 0.00390625
          %v861 = vmul.f32 %v853, 0.00390625
          %v862 = vmul.f32 %v854, 0.00390625
          %v863 = vmul.f32 %v855, 0.00390625
          %v864 = vadd.f32 %v856, 1e-05
          %v865 = vadd.f32 %v857, 1e-05
          %v866 = vadd.f32 %v858, 1e-05
          %v867 = vadd.f32 %v859, 1e-05
          %v868 = vadd.f32 %v860, 1e-05
          %v869 = vadd.f32 %v861, 1e-05
          %v870 = vadd.f32 %v862, 1e-05
          %v871 = vadd.f32 %v863, 1e-05
          %v872 = vrsqrt.pop %v864
          %v873 = vmul.f32 %v872, %v864
          %v874 = vmul.f32 %v873, %v872
          %v875 = vmul.f32 0.5, %v874
          %v876 = vsub.f32 1.5, %v875
          %v877 = vmul.f32 %v872, %v876
          %vm878 = vweird.f32 %v864
          %vm879 = vweird.f32 %v872
          %vm880 = vmor %vm878, %vm879
          %v881 = vsel %vm880, %v872, %v877
          %v882 = vrsqrt.pop %v865
          %v883 = vmul.f32 %v882, %v865
          %v884 = vmul.f32 %v883, %v882
          %v885 = vmul.f32 0.5, %v884
          %v886 = vsub.f32 1.5, %v885
          %v887 = vmul.f32 %v882, %v886
          %vm888 = vweird.f32 %v865
          %vm889 = vweird.f32 %v882
          %vm890 = vmor %vm888, %vm889
          %v891 = vsel %vm890, %v882, %v887
          %v892 = vrsqrt.pop %v866
          %v893 = vmul.f32 %v892, %v866
          %v894 = vmul.f32 %v893, %v892
          %v895 = vmul.f32 0.5, %v894
          %v896 = vsub.f32 1.5, %v895
          %v897 = vmul.f32 %v892, %v896
          %vm898 = vweird.f32 %v866
          %vm899 = vweird.f32 %v892
          %vm900 = vmor %vm898, %vm899
          %v901 = vsel %vm900, %v892, %v897
          %v902 = vrsqrt.pop %v867
          %v903 = vmul.f32 %v902, %v867
          %v904 = vmul.f32 %v903, %v902
          %v905 = vmul.f32 0.5, %v904
          %v906 = vsub.f32 1.5, %v905
          %v907 = vmul.f32 %v902, %v906
          %vm908 = vweird.f32 %v867
          %vm909 = vweird.f32 %v902
          %vm910 = vmor %vm908, %vm909
          %v911 = vsel %vm910, %v902, %v907
          %v912 = vrsqrt.pop %v868
          %v913 = vmul.f32 %v912, %v868
          %v914 = vmul.f32 %v913, %v912
          %v915 = vmul.f32 0.5, %v914
          %v916 = vsub.f32 1.5, %v915
          %v917 = vmul.f32 %v912, %v916
          %vm918 = vweird.f32 %v868
          %vm919 = vweird.f32 %v912
          %vm920 = vmor %vm918, %vm919
          %v921 = vsel %vm920, %v912, %v917
          %v922 = vrsqrt.pop %v869
          %v923 = vmul.f32 %v922, %v869
          %v924 = vmul.f32 %v923, %v922
          %v925 = vmul.f32 0.5, %v924
          %v926 = vsub.f32 1.5, %v925
          %v927 = vmul.f32 %v922, %v926
          %vm928 = vweird.f32 %v869
          %vm929 = vweird.f32 %v922
          %vm930 = vmor %vm928, %vm929
          %v931 = vsel %vm930, %v922, %v927
          %v932 = vrsqrt.pop %v870
          %v933 = vmul.f32 %v932, %v870
          %v934 = vmul.f32 %v933, %v932
          %v935 = vmul.f32 0.5, %v934
          %v936 = vsub.f32 1.5, %v935
          %v937 = vmul.f32 %v932, %v936
          %vm938 = vweird.f32 %v870
          %vm939 = vweird.f32 %v932
          %vm940 = vmor %vm938, %vm939
          %v941 = vsel %vm940, %v932, %v937
          %v942 = vrsqrt.pop %v871
          %v943 = vmul.f32 %v942, %v871
          %v944 = vmul.f32 %v943, %v942
          %v945 = vmul.f32 0.5, %v944
          %v946 = vsub.f32 1.5, %v945
          %v947 = vmul.f32 %v942, %v946
          %vm948 = vweird.f32 %v871
          %vm949 = vweird.f32 %v942
          %vm950 = vmor %vm948, %vm949
          %v951 = vsel %vm950, %v942, %v947
          %v952 = vld [vmem:[#allocation2] sm:$0xff]
          %v953 = vld [vmem:[#allocation2 + $0x8] sm:$0xff]
          %v954 = vld [vmem:[#allocation2 + $0x10] sm:$0xff]
          %v955 = vld [vmem:[#allocation2 + $0x18] sm:$0xff]
          %v956 = vld [vmem:[#allocation2 + $0x20] sm:$0xff]
          %v957 = vld [vmem:[#allocation2 + $0x28] sm:$0xff]
          %v958 = vld [vmem:[#allocation2 + $0x30] sm:$0xff]
          %v959 = vld [vmem:[#allocation2 + $0x38] sm:$0xff]
          %961 = vset.pattern.permute.xlu0 0
          %962 = vperm.xlu0 %961, %v952
          %v963 = vpop.permute.xlu0 %962
          %966 = vset.pattern.permute.xlu0 0
          %967 = vperm.xlu0 %966, %v953
          %v968 = vpop.permute.xlu0 %967
          %971 = vset.pattern.permute.xlu0 0
          %972 = vperm.xlu0 %971, %v954
          %v973 = vpop.permute.xlu0 %972
          %976 = vset.pattern.permute.xlu0 0
          %977 = vperm.xlu0 %976, %v955
          %v978 = vpop.permute.xlu0 %977
          %981 = vset.pattern.permute.xlu0 0
          %982 = vperm.xlu0 %981, %v956
          %v983 = vpop.permute.xlu0 %982
          %986 = vset.pattern.permute.xlu0 0
          %987 = vperm.xlu0 %986, %v957
          %v988 = vpop.permute.xlu0 %987
          %991 = vset.pattern.permute.xlu0 0
          %992 = vperm.xlu0 %991, %v958
          %v993 = vpop.permute.xlu0 %992
          %996 = vset.pattern.permute.xlu0 0
          %997 = vperm.xlu0 %996, %v959
          %v998 = vpop.permute.xlu0 %997
          %v1000 = vsub.f32 %v549, %v963
          %v1001 = vsub.f32 %v590, %v963
          %v1002 = vsub.f32 %v552, %v968
          %v1003 = vsub.f32 %v593, %v968
          %v1004 = vsub.f32 %v555, %v973
          %v1005 = vsub.f32 %v596, %v973
          %v1006 = vsub.f32 %v558, %v978
          %v1007 = vsub.f32 %v599, %v978
          %v1008 = vsub.f32 %v561, %v983
          %v1009 = vsub.f32 %v602, %v983
          %v1010 = vsub.f32 %v564, %v988
          %v1011 = vsub.f32 %v605, %v988
          %v1012 = vsub.f32 %v567, %v993
          %v1013 = vsub.f32 %v608, %v993
          %v1014 = vsub.f32 %v570, %v998
          %v1015 = vsub.f32 %v611, %v998
          %1017 = vset.pattern.permute.xlu0 0
          %1018 = vperm.xlu0 %1017, %v881
          %v1019 = vpop.permute.xlu0 %1018
          %1022 = vset.pattern.permute.xlu0 0
          %1023 = vperm.xlu0 %1022, %v891
          %v1024 = vpop.permute.xlu0 %1023
          %1027 = vset.pattern.permute.xlu0 0
          %1028 = vperm.xlu0 %1027, %v901
          %v1029 = vpop.permute.xlu0 %1028
          %1032 = vset.pattern.permute.xlu0 0
          %1033 = vperm.xlu0 %1032, %v911
          %v1034 = vpop.permute.xlu0 %1033
          %1037 = vset.pattern.permute.xlu0 0
          %1038 = vperm.xlu0 %1037, %v921
          %v1039 = vpop.permute.xlu0 %1038
          %1042 = vset.pattern.permute.xlu0 0
          %1043 = vperm.xlu0 %1042, %v931
          %v1044 = vpop.permute.xlu0 %1043
          %1047 = vset.pattern.permute.xlu0 0
          %1048 = vperm.xlu0 %1047, %v941
          %v1049 = vpop.permute.xlu0 %1048
          %1052 = vset.pattern.permute.xlu0 0
          %1053 = vperm.xlu0 %1052, %v951
          %v1054 = vpop.permute.xlu0 %1053
          %v1056 = vmul.f32 %v1000, %v1019
          %v1057 = vmul.f32 %v1001, %v1019
          %v1058 = vmul.f32 %v1002, %v1024
          %v1059 = vmul.f32 %v1003, %v1024
          %v1060 = vmul.f32 %v1004, %v1029
          %v1061 = vmul.f32 %v1005, %v1029
          %v1062 = vmul.f32 %v1006, %v1034
          %v1063 = vmul.f32 %v1007, %v1034
          %v1064 = vmul.f32 %v1008, %v1039
          %v1065 = vmul.f32 %v1009, %v1039
          %v1066 = vmul.f32 %v1010, %v1044
          %v1067 = vmul.f32 %v1011, %v1044
          %v1068 = vmul.f32 %v1012, %v1049
          %v1069 = vmul.f32 %v1013, %v1049
          %v1070 = vmul.f32 %v1014, %v1054
          %v1071 = vmul.f32 %v1015, %v1054
          %vm1072 = vcmp.gt.f32.partialorder %v1056, 0.0
          %vm1073 = vcmp.gt.f32.partialorder %v1057, 0.0
          %vm1074 = vcmp.gt.f32.partialorder %v1058, 0.0
          %vm1075 = vcmp.gt.f32.partialorder %v1059, 0.0
          %vm1076 = vcmp.gt.f32.partialorder %v1060, 0.0
          %vm1077 = vcmp.gt.f32.partialorder %v1061, 0.0
          %vm1078 = vcmp.gt.f32.partialorder %v1062, 0.0
          %vm1079 = vcmp.gt.f32.partialorder %v1063, 0.0
          %vm1080 = vcmp.gt.f32.partialorder %v1064, 0.0
          %vm1081 = vcmp.gt.f32.partialorder %v1065, 0.0
          %vm1082 = vcmp.gt.f32.partialorder %v1066, 0.0
          %vm1083 = vcmp.gt.f32.partialorder %v1067, 0.0
          %vm1084 = vcmp.gt.f32.partialorder %v1068, 0.0
          %vm1085 = vcmp.gt.f32.partialorder %v1069, 0.0
          %vm1086 = vcmp.gt.f32.partialorder %v1070, 0.0
          %vm1087 = vcmp.gt.f32.partialorder %v1071, 0.0
          %v1088 = vmul.f32 %v1056, 0.2
          %v1089 = vmul.f32 %v1057, 0.2
          %v1090 = vmul.f32 %v1058, 0.2
          %v1091 = vmul.f32 %v1059, 0.2
          %v1092 = vmul.f32 %v1060, 0.2
          %v1093 = vmul.f32 %v1061, 0.2
          %v1094 = vmul.f32 %v1062, 0.2
          %v1095 = vmul.f32 %v1063, 0.2
          %v1096 = vmul.f32 %v1064, 0.2
          %v1097 = vmul.f32 %v1065, 0.2
          %v1098 = vmul.f32 %v1066, 0.2
          %v1099 = vmul.f32 %v1067, 0.2
          %v1100 = vmul.f32 %v1068, 0.2
          %v1101 = vmul.f32 %v1069, 0.2
          %v1102 = vmul.f32 %v1070, 0.2
          %v1103 = vmul.f32 %v1071, 0.2
          %v1104 = vsel %vm1072, %v1056, %v1088
          %v1105 = vsel %vm1073, %v1057, %v1089
          %v1106 = vsel %vm1074, %v1058, %v1090
          %v1107 = vsel %vm1075, %v1059, %v1091
          %v1108 = vsel %vm1076, %v1060, %v1092
          %v1109 = vsel %vm1077, %v1061, %v1093
          %v1110 = vsel %vm1078, %v1062, %v1094
          %v1111 = vsel %vm1079, %v1063, %v1095
          %v1112 = vsel %vm1080, %v1064, %v1096
          %v1113 = vsel %vm1081, %v1065, %v1097
          %v1114 = vsel %vm1082, %v1066, %v1098
          %v1115 = vsel %vm1083, %v1067, %v1099
          %v1116 = vsel %vm1084, %v1068, %v1100
          %v1117 = vsel %vm1085, %v1069, %v1101
          %v1118 = vsel %vm1086, %v1070, %v1102
          %v1119 = vsel %vm1087, %v1071, %v1103
          %v1120 = vld [vmem:[%s5] sm:$0xff]
          %v1121 = vld [vmem:[%s5 + $0x8] sm:$0xff]
          %v1122 = vld [vmem:[%s5 + $0x10] sm:$0xff]
          %v1123 = vld [vmem:[%s5 + $0x18] sm:$0xff]
          %v1124 = vld [vmem:[%s5 + $0x20] sm:$0xff]
          %v1125 = vld [vmem:[%s5 + $0x28] sm:$0xff]
          %v1126 = vld [vmem:[%s5 + $0x30] sm:$0xff]
          %v1127 = vld [vmem:[%s5 + $0x38] sm:$0xff]
          %1129 = vset.pattern.permute.xlu0 0
          %1130 = vperm.xlu0 %1129, %v1120
          %v1131 = vpop.permute.xlu0 %1130
          %1134 = vset.pattern.permute.xlu0 0
          %1135 = vperm.xlu0 %1134, %v1121
          %v1136 = vpop.permute.xlu0 %1135
          %1139 = vset.pattern.permute.xlu0 0
          %1140 = vperm.xlu0 %1139, %v1122
          %v1141 = vpop.permute.xlu0 %1140
          %1144 = vset.pattern.permute.xlu0 0
          %1145 = vperm.xlu0 %1144, %v1123
          %v1146 = vpop.permute.xlu0 %1145
          %1149 = vset.pattern.permute.xlu0 0
          %1150 = vperm.xlu0 %1149, %v1124
          %v1151 = vpop.permute.xlu0 %1150
          %1154 = vset.pattern.permute.xlu0 0
          %1155 = vperm.xlu0 %1154, %v1125
          %v1156 = vpop.permute.xlu0 %1155
          %1159 = vset.pattern.permute.xlu0 0
          %1160 = vperm.xlu0 %1159, %v1126
          %v1161 = vpop.permute.xlu0 %1160
          %1164 = vset.pattern.permute.xlu0 0
          %1165 = vperm.xlu0 %1164, %v1127
          %v1166 = vpop.permute.xlu0 %1165
          %v1168 = vmul.f32 %v1131, %v1104
          %v1169 = vmul.f32 %v1131, %v1105
          %v1170 = vmul.f32 %v1136, %v1106
          %v1171 = vmul.f32 %v1136, %v1107
          %v1172 = vmul.f32 %v1141, %v1108
          %v1173 = vmul.f32 %v1141, %v1109
          %v1174 = vmul.f32 %v1146, %v1110
          %v1175 = vmul.f32 %v1146, %v1111
          %v1176 = vmul.f32 %v1151, %v1112
          %v1177 = vmul.f32 %v1151, %v1113
          %v1178 = vmul.f32 %v1156, %v1114
          %v1179 = vmul.f32 %v1156, %v1115
          %v1180 = vmul.f32 %v1161, %v1116
          %v1181 = vmul.f32 %v1161, %v1117
          %v1182 = vmul.f32 %v1166, %v1118
          %v1183 = vmul.f32 %v1166, %v1119
          %v1184 = vadd.f32 %v1168, %v1170
          %v1185 = vadd.f32 %v1184, %v1172
          %v1186 = vadd.f32 %v1185, %v1174
          %v1187 = vadd.f32 %v1186, %v1176
          %v1188 = vadd.f32 %v1187, %v1178
          %v1189 = vadd.f32 %v1188, %v1180
          %v1190 = vadd.f32 %v1189, %v1182
          %v1191 = vrot.slane %v1190, 4
          %v1192 = vadd.f32 %v1190, %v1191
          %v1193 = vrot.slane %v1192, 2
          %v1194 = vadd.f32 %v1192, %v1193
          %v1195 = vrot.slane %v1194, 1
          %v1196 = vadd.f32 %v1194, %v1195
          %v1197 = vadd.f32 %v1169, %v1171
          %v1198 = vadd.f32 %v1197, %v1173
          %v1199 = vadd.f32 %v1198, %v1175
          %v1200 = vadd.f32 %v1199, %v1177
          %v1201 = vadd.f32 %v1200, %v1179
          %v1202 = vadd.f32 %v1201, %v1181
          %v1203 = vadd.f32 %v1202, %v1183
          %v1204 = vrot.slane %v1203, 4
          %v1205 = vadd.f32 %v1203, %v1204
          %v1206 = vrot.slane %v1205, 2
          %v1207 = vadd.f32 %v1205, %v1206
          %v1208 = vrot.slane %v1207, 1
          %v1209 = vadd.f32 %v1207, %v1208
          %v1210 = vld [vmem:[#allocation4] sm:$0x1]
          %1212 = vset.pattern.permute.xlu0 0
          %1213 = vperm.xlu0 %1212, %v1210
          %v1214 = vpop.permute.xlu0 %1213
          %v1216 = vperm.slane %v1214, 0
          %v1217 = vadd.f32 %v1196, %v1216
          %v1218 = vadd.f32 %v1209, %v1216
          %v1221 = vrot.slane %v1218, 7
          %vm1222 = vcmask 1040384
          %v1223 = vsel %vm1222, %v1217, %v1221
          %v1225 = vlaneseq
          %vm1226 = vcmp.ge.s32.totalorder %v1225, 0
          %vm1227 = vcmp.lt.s32.totalorder %v1225, 256
          %vm1228 = vmand %vm1226, %vm1227
          %1229 = vst.msk [vmem:[%s305] sm:$0x3] %vm1228, %v1223
        $region60: #{tpu_custom_call.1} parent=47 // pred_fallthru
          _
        %s1230 = sand.u32 %s206, 1
        %s1231 = scalar_lea.sflag [#allocation6], %s1230
        %s1232 = sand.u32 %s206, 1
        %s1233 = smul.addr %s1232, 2
        %s1234 = scalar_lea.vmem [#allocation5], %s1233
        // Predicated region
        $region61: #{tpu_custom_call.1} parent=47 // pred_check
          %p1235 = pneg %p216
        $region62: #{tpu_custom_call.1} parent=47 // pred_check_branch
          %1237 = sbr.rel (%p1235) target = $region64
        $region63: #{tpu_custom_call.1} parent=47 // pred_region
          %s1238 = smul.u32 2, %s30
          %1240 = vsyncadd %s1231, 0
          %s1241 = smul.addr %s28, 2
          %s1242 = sadd.s32 %s1238, %s1241
          %s1243 = scalar_lea.hbm %s7, %s1242
          %s1245 = sshll.u32 %s1234, 4
          %s1246 = int_to_ptr.vmem [resolvable:$true] %s1245
          %s1247 = sshll.u32 %s1243, 4
          %s1248 = int_to_ptr.hbm [resolvable:$true] %s1247
          %1250 = dma.vmem_to_hbm [thread:$0]  %s1246, 32, %s1248, %s1231
        $region64: #{tpu_custom_call.1} parent=47 // pred_fallthru
          _
      $region48: #{tpu_custom_call.1} parent=5 // pred_fallthru
        _
      %p1251 = scmp.le.s32.totalorder 2, %s18
      // Predicated region
      $region65: #{tpu_custom_call.1} parent=5 // pred_check
        %p1252 = pneg %p1251
      $region66: #{tpu_custom_call.1} parent=5 // pred_check_branch
        %1254 = sbr.rel (%p1252) target = $region68
      $region67: #{tpu_custom_call.1} parent=5 // pred_region
        %s1255 = ssub.s32 %s18, 2
        // Predicated region
        $region69: #{tpu_custom_call.1} parent=67 // pred_check
          %p1256 = pneg %p222
        $region70: #{tpu_custom_call.1} parent=67 // pred_check_branch
          %1258 = sbr.rel (%p1256) target = $region72
        $region71: #{tpu_custom_call.1} parent=67 // pred_region
          %s1259 = sand.u32 %s207, 1
          %s1260 = scalar_lea.sflag [#allocation6], %s1259
          %s1261 = sand.u32 %s207, 1
          %s1262 = smul.addr %s1261, 2
          %s1263 = scalar_lea.vmem [#allocation5], %s1262
          %1265 = dma.done %s1260, 32
        $region72: #{tpu_custom_call.1} parent=67 // pred_fallthru
          _
      $region68: #{tpu_custom_call.1} parent=5 // pred_fallthru
        _
    $region6: #{tpu_custom_call.1} parent=1 // loop_footer
      %s22 = sadd.s32 1, %s18
    $region7: #{tpu_custom_call.1} parent=1 // loop_footer_branch
      %17 = sbr.rel target = $region3
    $region8: #{tpu_custom_call.1} parent=1 // loop_exit
      _
    %1266 = vsyncpa [#allocation6], 1
    %s1267 = scalar_lea.sflag [#allocation6], 1
    %1268 = vsyncpa %s1267, 1

</llo_original>
